<compile_context>
chip_gen: v5e
topology: v5e:2x2
jax: 0.10.0
libtpu: 0.0.40
codegen_flags: <defaults>
</compile_context>

<pallas_src>
import functools
import math

import jax
import jax.numpy as jnp
from jax.experimental import pallas as pl
from jax.experimental.pallas import tpu as pltpu


# --------------------------------------------------------------------------
# Helpers
# --------------------------------------------------------------------------
def _round_up(x, m):
    return ((x + m - 1) // m) * m


def _cdiv(a, b):
    return -(-a // b)


def _sublane_multiple(dtype):
    # Minimum second-to-last-dim tile: 8 rows (32-bit), 16 (bf16), 32 (int8/fp8).
    return max(8, 32 // jnp.dtype(dtype).itemsize)


def _pick_tile(dim, target, align):
    """Evenly split `dim` into ~`target`-sized tiles, each a multiple of `align`."""
    dim = max(1, int(dim))
    target = max(align, _round_up(int(target), align))
    n_tiles = max(1, _cdiv(dim, target))
    return _round_up(_cdiv(dim, n_tiles), align)


def _vmem_cap_bytes():
    """Generation-aware VMEM budget (~75% of physical), conservative fallback."""
    try:
        cap = int(pltpu.get_tpu_info().vmem_capacity_bytes)
        return max(32 * 1024 * 1024, (cap * 3) // 4)   # ~96 MiB on 128 MiB parts, ~48 MiB on v7x
    except Exception:
        return 48 * 1024 * 1024


# --------------------------------------------------------------------------
# Kernels
# --------------------------------------------------------------------------
def _mm_loop_kernel(x_ref, w_ref, o_ref, acc_ref, *, acc_dtype):
    k = pl.program_id(2)

    @pl.when(k == 0)
    def _():
        acc_ref[...] = jnp.zeros_like(acc_ref)

    acc_ref[...] += jnp.dot(x_ref[...], w_ref[...],
                            preferred_element_type=acc_dtype)

    @pl.when(k == pl.num_programs(2) - 1)
    def _():
        o_ref[...] = acc_ref[...].astype(o_ref.dtype)


def _mm_loop_bias_kernel(x_ref, w_ref, b_ref, o_ref, acc_ref, *, acc_dtype):
    k = pl.program_id(2)

    @pl.when(k == 0)
    def _():
        acc_ref[...] = jnp.zeros_like(acc_ref)

    acc_ref[...] += jnp.dot(x_ref[...], w_ref[...],
                            preferred_element_type=acc_dtype)

    @pl.when(k == pl.num_programs(2) - 1)
    def _():
        # Bias already prepared in the accumulation dtype: one VPU add, no cast.
        o_ref[...] = (acc_ref[...] + b_ref[...]).astype(o_ref.dtype)


def _mm_single_kernel(x_ref, w_ref, o_ref, *, acc_dtype):
    # Single K pass: no accumulator scratch / init / read-modify-write.
    o_ref[...] = jnp.dot(x_ref[...], w_ref[...],
                         preferred_element_type=acc_dtype).astype(o_ref.dtype)


def _mm_single_bias_kernel(x_ref, w_ref, b_ref, o_ref, *, acc_dtype):
    o_ref[...] = (jnp.dot(x_ref[...], w_ref[...],
                          preferred_element_type=acc_dtype)
                  + b_ref[...]).astype(o_ref.dtype)


# --------------------------------------------------------------------------
# Wrapper
# --------------------------------------------------------------------------
@functools.partial(jax.jit,
                   static_argnames=("tm", "tn", "tk", "w_buffers", "compute_dtype"))
def custom_linear(x, weight, bias=None, *, tm=None, tn=None, tk=None,
                  w_buffers=2, compute_dtype=None):
    """Pallas implementation of CustomLinear.forward.

    x:       (..., in_channels)
    weight:  (in_channels, out_channels)
    bias:    (out_channels,) or None
    tm/tn/tk:       tile overrides (None = dtype-aware defaults).
    w_buffers:      pipeline depth for the weight operand (2 = double buffer).
    compute_dtype:  opt-in low-precision MXU path (e.g. jnp.bfloat16); output
                    dtype and f32 accumulation are preserved.
    """
    in_channels, out_channels = weight.shape
    lead = x.shape[:-1]
    m = int(math.prod(lead)) if lead else 1
    x2 = x.reshape(m, in_channels)
    out_dtype = x.dtype

    # ---- Compute / accumulation dtypes ----
    cdtype = jnp.dtype(compute_dtype) if compute_dtype is not None else jnp.dtype(x.dtype)
    if x2.dtype != cdtype:
        x2 = x2.astype(cdtype)
    w2 = weight if weight.dtype == cdtype else weight.astype(cdtype)
    acc_dtype = jnp.int32 if jnp.issubdtype(cdtype, jnp.integer) else jnp.float32

    # ---- Tile targets (dtype-aware defaults) ----
    itemsize = jnp.dtype(cdtype).itemsize
    tm_target = tm if tm is not None else (1024 if itemsize <= 2 else 512)
    tn_target = tn if tn is not None else 1024
    tk_target = tk if tk is not None else (1024 if itemsize <= 2 else 512)

    sub = _sublane_multiple(cdtype)
    align_n = 256 if out_channels >= 256 else 128   # 256-wide MXU on v6e/v7x
    align_k = 256 if in_channels >= 256 else 128

    tm_eff = _pick_tile(m, tm_target, sub)
    tn_eff = _pick_tile(out_channels, tn_target, align_n)
    tk_eff = _pick_tile(in_channels, tk_target, align_k)

    # ---- Shrink tiles if the working set would blow the VMEM budget ----
    cap = _vmem_cap_bytes()
    in_b = jnp.dtype(x2.dtype).itemsize
    w_b = jnp.dtype(w2.dtype).itemsize
    out_b = jnp.dtype(out_dtype).itemsize
    acc_b = jnp.dtype(acc_dtype).itemsize
    wbuf = max(2, int(w_buffers))

    def _working(tm_, tn_, tk_):
        return (2 * tm_ * tk_ * in_b          # x (double buffered)
                + wbuf * tk_ * tn_ * w_b      # W
                + 2 * tm_ * tn_ * out_b       # output
                + 2 * tn_ * acc_b             # bias row
                + tm_ * tn_ * acc_b)          # accumulator (worst case)

    budget = (cap * 9) // 10
    for _ in range(16):
        if _working(tm_eff, tn_eff, tk_eff) <= budget:
            break
        if tk_eff >= 2 * align_k:
            tk_eff = _round_up(tk_eff // 2, align_k)
        elif tn_eff >= 2 * align_n:
            tn_eff = _round_up(tn_eff // 2, align_n)
        elif tm_eff >= 2 * sub:
            tm_eff = _round_up(tm_eff // 2, sub)
        else:
            break

    m_pad = _round_up(m, tm_eff)
    n_pad = _round_up(out_channels, tn_eff)
    k_pad = _round_up(in_channels, tk_eff)
    gm, gn, gk = m_pad // tm_eff, n_pad // tn_eff, k_pad // tk_eff

    # ---- Guarantee >= 2 parallel output tiles when the problem allows it
    #      (keeps both v7x TensorCores busy; cheap elsewhere). ----
    if gm * gn == 1:
        new_tm = _round_up(max(1, _cdiv(m, 2)), sub)
        if new_tm < m and m >= 2 * sub:
            tm_eff = new_tm
        else:
            new_tn = _round_up(max(1, _cdiv(out_channels, 2)), align_n)
            if new_tn < out_channels and out_channels >= 2 * align_n:
                tn_eff = new_tn
        m_pad = _round_up(m, tm_eff)
        n_pad = _round_up(out_channels, tn_eff)
        gm, gn = m_pad // tm_eff, n_pad // tn_eff

    # ---- Zero-pad operands only when actually misaligned (exact for matmul) ----
    if (m_pad, k_pad) != (m, in_channels):
        x2 = jnp.pad(x2, ((0, m_pad - m), (0, k_pad - in_channels)))
    if (k_pad, n_pad) != (in_channels, out_channels):
        w2 = jnp.pad(w2, ((0, k_pad - in_channels), (0, n_pad - out_channels)))

    # ---- VMEM limit ----
    need = _working(tm_eff, tn_eff, tk_eff)
    vmem_limit = int(min(cap, max(need + need // 2, 32 * 1024 * 1024)))

    # ---- Specs ----
    out_shape = jax.ShapeDtypeStruct((m_pad, n_pad), out_dtype)
    w_kwargs = {}
    if w_buffers is not None and int(w_buffers) != 2:
        w_kwargs["pipeline_mode"] = pl.Buffered(int(w_buffers))

    has_bias = bias is not None
    if has_bias:
        b2 = bias.astype(acc_dtype).reshape(1, out_channels)
        if n_pad != out_channels:
            b2 = jnp.pad(b2, ((0, 0), (0, n_pad - out_channels)))

    if gk == 1:
        # -------- Single-K fast path: 2-D parallel grid, no accumulator --------
        grid = (gm, gn)
        x_spec = pl.BlockSpec((tm_eff, tk_eff), lambda i, j: (i, 0))
        w_spec = pl.BlockSpec((tk_eff, tn_eff), lambda i, j: (0, j), **w_kwargs)
        o_spec = pl.BlockSpec((tm_eff, tn_eff), lambda i, j: (i, j))
        dims = ("parallel", "parallel")
        scratch = []
        if has_bias:
            b_spec = pl.BlockSpec((1, tn_eff), lambda i, j: (0, j))
            kernel = functools.partial(_mm_single_bias_kernel, acc_dtype=acc_dtype)
            in_specs, args = [x_spec, w_spec, b_spec], (x2, w2, b2)
        else:
            kernel = functools.partial(_mm_single_kernel, acc_dtype=acc_dtype)
            in_specs, args = [x_spec, w_spec], (x2, w2)
    else:
        # -------- K-looped path with resident accumulator --------
        grid = (gm, gn, gk)
        x_spec = pl.BlockSpec((tm_eff, tk_eff), lambda i, j, k: (i, k))
        w_spec = pl.BlockSpec((tk_eff, tn_eff), lambda i, j, k: (k, j), **w_kwargs)
        o_spec = pl.BlockSpec((tm_eff, tn_eff), lambda i, j, k: (i, j))
        dims = ("parallel", "parallel", "arbitrary")
        scratch = [pltpu.VMEM((tm_eff, tn_eff), acc_dtype)]
        if has_bias:
            b_spec = pl.BlockSpec((1, tn_eff), lambda i, j, k: (0, j))
            kernel = functools.partial(_mm_loop_bias_kernel, acc_dtype=acc_dtype)
            in_specs, args = [x_spec, w_spec, b_spec], (x2, w2, b2)
        else:
            kernel = functools.partial(_mm_loop_kernel, acc_dtype=acc_dtype)
            in_specs, args = [x_spec, w_spec], (x2, w2)

    out2 = pl.pallas_call(
        kernel,
        out_shape=out_shape,
        grid_spec=pltpu.PrefetchScalarGridSpec(
            num_scalar_prefetch=0,
            grid=grid,
            in_specs=in_specs,
            out_specs=o_spec,
            scratch_shapes=scratch,
        ),
        compiler_params=pltpu.CompilerParams(
            dimension_semantics=dims,
            vmem_limit_bytes=vmem_limit,
        ),
    )(*args)

    out2 = out2[:m, :out_channels]
    return out2.reshape(*lead, out_channels)


# --------------------------------------------------------------------------
# Init matching the torch module: U(-1/sqrt(in), 1/sqrt(in))
# --------------------------------------------------------------------------
def init_custom_linear_params(key, in_channels, out_channels, bias=True,
                              dtype=jnp.float32):
    bound = 1.0 / jnp.sqrt(jnp.asarray(in_channels, dtype))
    kw, kb = jax.random.split(key)
    weight = jax.random.uniform(kw, (in_channels, out_channels), dtype,
                                minval=-bound, maxval=bound)
    b = (jax.random.uniform(kb, (out_channels,), dtype,
                            minval=-bound, maxval=bound) if bias else None)
    return weight, b


if __name__ == "__main__":
    key = jax.random.PRNGKey(0)
    k_x, k_p, k_x2, k_p2 = jax.random.split(key, 4)

    # Small shapes consistent with the module: (batch, seq, in) @ (in, out).
    batch, seq, in_channels, out_channels = 2, 8, 32, 64
    x = jax.random.normal(k_x, (batch, seq, in_channels), jnp.float32)
    weight, bias = init_custom_linear_params(k_p, in_channels, out_channels,
                                             bias=True)

    # With bias (single-K fast path).
    out = jax.block_until_ready(custom_linear(x, weight, bias))
    ref = jnp.matmul(x, weight) + bias
    assert out.shape == (batch, seq, out_channels)
    assert jnp.allclose(out, ref, atol=1e-5, rtol=1e-5)

    # Without bias.
    out_nb = jax.block_until_ready(custom_linear(x, weight, None))
    assert jnp.allclose(out_nb, jnp.matmul(x, weight), atol=1e-5, rtol=1e-5)

    # Exercise the K-looped accumulator path (grid K > 1) at small size.
    in2, out2_c = 384, 256
    x_b = jax.random.normal(k_x2, (4, in2), jnp.float32)
    w_b, b_b = init_custom_linear_params(k_p2, in2, out2_c, bias=True)
    out_b = jax.block_until_ready(custom_linear(x_b, w_b, b_b, tk=128))
    ref_b = jnp.matmul(x_b, w_b) + b_b
    assert out_b.shape == (4, out2_c)
    assert jnp.allclose(out_b, ref_b, atol=2e-4, rtol=2e-4)

    print("KERNEL_OK")
</pallas_src>

<mosaic_0001>
module attributes {stable_mosaic.version = 11 : i64} {
  func.func @_mm_single_bias_kernel(%arg0: i32, %arg1: i32, %arg2: memref<8x128xf32, #tpu.memory_space<vmem>>, %arg3: memref<128x128xf32, #tpu.memory_space<vmem>>, %arg4: memref<1x128xf32, #tpu.memory_space<vmem>>, %arg5: memref<8x128xf32, #tpu.memory_space<vmem>>) attributes {dimension_semantics = [#tpu.dimension_semantics<parallel>, #tpu.dimension_semantics<parallel>], iteration_bounds = array<i64: 2, 1>, scalar_prefetch = 0 : i64, scratch_operands = 0 : i64, tpu.core_type = #tpu.core_type<tc>, window_params = [{transform_indices = @transform_0, window_bounds = array<i64: 8, 128>}, {transform_indices = @transform_1, window_bounds = array<i64: 128, 128>}, {transform_indices = @transform_2, window_bounds = array<i64: 1, 128>}, {transform_indices = @transform_3, window_bounds = array<i64: 8, 128>}]} {
    %c0 = arith.constant 0 : index
    %c0_0 = arith.constant 0 : index
    %0 = vector.load %arg2[%c0, %c0_0] : memref<8x128xf32, #tpu.memory_space<vmem>>, vector<8x128xf32>
    %c0_1 = arith.constant 0 : index
    %c0_2 = arith.constant 0 : index
    %1 = vector.load %arg3[%c0_1, %c0_2] : memref<128x128xf32, #tpu.memory_space<vmem>>, vector<128x128xf32>
    %cst = arith.constant dense<0.000000e+00> : vector<8x128xf32>
    %2 = tpu.matmul %0, %1, %cst {dimension_numbers = #tpu.dot_dimension_numbers<[1], [0], [0], [1], [0, 0, 1, 1], [], []>} : vector<8x128xf32>, vector<128x128xf32>, vector<8x128xf32> -> vector<8x128xf32>
    %c0_3 = arith.constant 0 : index
    %c0_4 = arith.constant 0 : index
    %3 = vector.load %arg4[%c0_3, %c0_4] : memref<1x128xf32, #tpu.memory_space<vmem>>, vector<1x128xf32>
    %4 = vector.broadcast %3 : vector<1x128xf32> to vector<8x128xf32>
    %5 = arith.addf %2, %4 : vector<8x128xf32>
    %c0_5 = arith.constant 0 : index
    %c0_6 = arith.constant 0 : index
    %6 = vector.load %arg5[%c0_5, %c0_6] : memref<8x128xf32, #tpu.memory_space<vmem>>, vector<8x128xf32>
    tpu.vector_store %arg5[%c0_5, %c0_6], %5 {strides = array<i32>} : memref<8x128xf32, #tpu.memory_space<vmem>>, vector<8x128xf32>,
    return
  }
  func.func @transform_0(%arg0: i32, %arg1: i32) -> (i32, i32) {
    %c0_i32 = arith.constant 0 : i32
    %c0_i32_0 = arith.constant 0 : i32
    return %arg0, %c0_i32 : i32, i32
  }
  func.func @transform_1(%arg0: i32, %arg1: i32) -> (i32, i32) {
    %c0_i32 = arith.constant 0 : i32
    %c0_i32_0 = arith.constant 0 : i32
    return %c0_i32, %arg1 : i32, i32
  }
  func.func @transform_2(%arg0: i32, %arg1: i32) -> (i32, i32) {
    %c0_i32 = arith.constant 0 : i32
    %c0_i32_0 = arith.constant 0 : i32
    return %c0_i32, %arg1 : i32, i32
  }
  func.func @transform_3(%arg0: i32, %arg1: i32) -> (i32, i32) {
    %c0_i32 = arith.constant 0 : i32
    return %arg0, %arg1 : i32, i32
  }
}

</mosaic_0001>

<llo_original>
// kernel: custom_linear.1
$region0: #{custom_linear.1}
  #allocation0 [shape = 'u32[]', space=smem, size = 0x4, offset = 0x4, fixed_abs, tag = 'smem constant byte address 0x4 - core index']
  #allocation1 [shape = 'u32[72,128]{1,0:T(1,128)}', space=vmem, size = 0x9000, scoped, tag = 'internal scratch']
  %s0 = inlined_call_operand.vmem [shape: f32[16,128], index: 0, kind: input, shape index: {}]
  %s1 = inlined_call_operand.vmem [shape: f32[128,128], index: 1, kind: input, shape index: {}]
  %s2 = inlined_call_operand.vmem [shape: f32[1,128], index: 2, kind: input, shape index: {}]
  %s3 = inlined_call_operand.vmem [shape: f32[16,128], index: 3, kind: output, shape index: {}]
  %s4 = sld [smem:[#allocation0]]
  $region45: #{custom_linear.1} parent=0
    _
  %s6 = ssub.s32 1, %s4
  %s7 = scalar_select 0, %s6, %s4
  loop: start=0, step=1, limit=4
  $region2: #{custom_linear.1} parent=0 // loop_pre_header
    _
  $region3: #{custom_linear.1} parent=0 // loop_header
    %s9 = sphi 0, %s13
    %p10 = scmp.ge.s32.totalorder %s9, 4
    %s16 = sphi 0, %s28
    %s17 = sphi 0, %s24
    %s18 = sphi 0, %s16
    %s19 = sphi 0, %s17
    %s20 = sphi 0, %s18
    %s21 = sphi 0, %s19
    %s31 = sphi 0, %s33
    %s34 = sphi 0, %s31
    %s35 = sphi 0, %s34
    %s51 = sphi 0, %s35
    %s57 = sphi 0, %s59
    %s60 = sphi 0, %s57
    %s61 = sphi 0, %s60
    %s77 = sphi 0, %s61
    %s83 = sphi 0, %s85
    %s86 = sphi 0, %s83
    %s87 = sphi 0, %s86
    %s103 = sphi 0, %s87
    %s111 = sphi 0, %s113
    %s114 = sphi 0, %s111
    %s115 = sphi 0, %s114
    %s131 = sphi 0, %s115
  $region4: #{custom_linear.1} parent=0 // loop_header_branch
    %12 = sbr.rel (%p10) target = $region8
  $region5: #{custom_linear.1} parent=0 // loop_body
    %s14 = ssub.s32 %s9, 1
    %s15 = ssub.s32 %s9, 2
    %s22 = sadd.s32 1, %s17
    %p23 = scmp.ge.s32.totalorder %s22, 1
    %s24 = scalar_select %p23, 0, %s22
    %s25 = sadd.s32 1, %s16
    %s26 = scalar_select %p23, %s25, %s16
    %p27 = scmp.ge.s32.totalorder %s26, 2
    %s28 = scalar_select %p27, 0, %s26
    %s29 = ssub.s32 %s16, %s28
    %p30 = scmp.eq.s32.totalorder %s29, 0
    %s32 = sadd.s32 %s31, 1
    %s33 = scalar_select %p30, %s31, %s32
    %p36 = pneg %p30
    %p37 = scmp.eq.s32.totalorder %s9, 1
    %p38 = por %p36, %p37
    %p39 = scmp.ne.s32.totalorder %s31, %s34
    %p40 = scmp.eq.s32.totalorder %s9, 0
    %p41 = por %p39, %p40
    %p42 = scmp.ne.s32.totalorder %s31, %s34
    %p43 = scmp.eq.s32.totalorder %s14, 1
    %p44 = por %p42, %p43
    %p45 = scmp.ne.s32.totalorder %s34, %s35
    %p46 = scmp.eq.s32.totalorder %s14, 0
    %p47 = por %p45, %p46
    %p48 = scmp.ne.s32.totalorder %s34, %s35
    %p49 = scmp.eq.s32.totalorder %s15, 1
    %p50 = por %p48, %p49
    %p52 = scmp.ne.s32.totalorder %s35, %s51
    %p53 = scmp.eq.s32.totalorder %s15, 0
    %p54 = por %p52, %p53
    %s55 = ssub.s32 %s17, %s24
    %p56 = scmp.eq.s32.totalorder %s55, 0
    %s58 = sadd.s32 %s57, 1
    %s59 = scalar_select %p56, %s57, %s58
    %p62 = pneg %p56
    %p63 = scmp.eq.s32.totalorder %s9, 1
    %p64 = por %p62, %p63
    %p65 = scmp.ne.s32.totalorder %s57, %s60
    %p66 = scmp.eq.s32.totalorder %s9, 0
    %p67 = por %p65, %p66
    %p68 = scmp.ne.s32.totalorder %s57, %s60
    %p69 = scmp.eq.s32.totalorder %s14, 1
    %p70 = por %p68, %p69
    %p71 = scmp.ne.s32.totalorder %s60, %s61
    %p72 = scmp.eq.s32.totalorder %s14, 0
    %p73 = por %p71, %p72
    %p74 = scmp.ne.s32.totalorder %s60, %s61
    %p75 = scmp.eq.s32.totalorder %s15, 1
    %p76 = por %p74, %p75
    %p78 = scmp.ne.s32.totalorder %s61, %s77
    %p79 = scmp.eq.s32.totalorder %s15, 0
    %p80 = por %p78, %p79
    %s81 = ssub.s32 %s17, %s24
    %p82 = scmp.eq.s32.totalorder %s81, 0
    %s84 = sadd.s32 %s83, 1
    %s85 = scalar_select %p82, %s83, %s84
    %p88 = pneg %p82
    %p89 = scmp.eq.s32.totalorder %s9, 1
    %p90 = por %p88, %p89
    %p91 = scmp.ne.s32.totalorder %s83, %s86
    %p92 = scmp.eq.s32.totalorder %s9, 0
    %p93 = por %p91, %p92
    %p94 = scmp.ne.s32.totalorder %s83, %s86
    %p95 = scmp.eq.s32.totalorder %s14, 1
    %p96 = por %p94, %p95
    %p97 = scmp.ne.s32.totalorder %s86, %s87
    %p98 = scmp.eq.s32.totalorder %s14, 0
    %p99 = por %p97, %p98
    %p100 = scmp.ne.s32.totalorder %s86, %s87
    %p101 = scmp.eq.s32.totalorder %s15, 1
    %p102 = por %p100, %p101
    %p104 = scmp.ne.s32.totalorder %s87, %s103
    %p105 = scmp.eq.s32.totalorder %s15, 0
    %p106 = por %p104, %p105
    %s107 = ssub.s32 %s16, %s28
    %s108 = ssub.s32 %s17, %s24
    %s109 = sor.u32 %s107, %s108
    %p110 = scmp.eq.s32.totalorder %s109, 0
    %s112 = sadd.s32 %s111, 1
    %s113 = scalar_select %p110, %s111, %s112
    %p116 = pneg %p110
    %p117 = scmp.eq.s32.totalorder %s9, 1
    %p118 = por %p116, %p117
    %p119 = scmp.ne.s32.totalorder %s111, %s114
    %p120 = scmp.eq.s32.totalorder %s9, 0
    %p121 = por %p119, %p120
    %p122 = scmp.ne.s32.totalorder %s111, %s114
    %p123 = scmp.eq.s32.totalorder %s14, 1
    %p124 = por %p122, %p123
    %p125 = scmp.ne.s32.totalorder %s114, %s115
    %p126 = scmp.eq.s32.totalorder %s14, 0
    %p127 = por %p125, %p126
    %p128 = scmp.ne.s32.totalorder %s114, %s115
    %p129 = scmp.eq.s32.totalorder %s15, 1
    %p130 = por %p128, %p129
    %p132 = scmp.ne.s32.totalorder %s115, %s131
    %p133 = scmp.eq.s32.totalorder %s15, 0
    %p134 = por %p132, %p133
    %p135 = scmp.le.s32.totalorder 1, %s9
    %p136 = scmp.lt.s32.totalorder %s9, 3
    %p137 = pnand %p135, %p136
    %p138 = pneg %p137
    // Predicated region
    $region9: #{custom_linear.1} parent=5 // pred_check
      _
    $region10: #{custom_linear.1} parent=5 // pred_check_branch
      %140 = sbr.rel (%p137) target = $region12
    $region11: #{custom_linear.1} parent=5 // pred_region
      %s141 = ssub.s32 %s9, 1
      // Predicated region
      $region13: #{custom_linear.1} parent=11 // pred_check
        %p142 = pneg %p73
      $region14: #{custom_linear.1} parent=11 // pred_check_branch
        %144 = sbr.rel (%p142) target = $region16
      $region15: #{custom_linear.1} parent=11 // pred_region
        %p145 = scmp.lt.s32.totalorder %s19, 0
        %s146 = scalar_select %p145, %s19, 0
        %s147 = smul.addr %s146, 8
        %s148 = scalar_lea.vmem %s1, %s147
      $region16: #{custom_linear.1} parent=11 // pred_fallthru
        _
      // Predicated region
      $region17: #{custom_linear.1} parent=11 // pred_check
        %p149 = pneg %p99
      $region18: #{custom_linear.1} parent=11 // pred_check_branch
        %151 = sbr.rel (%p149) target = $region20
      $region19: #{custom_linear.1} parent=11 // pred_region
        %p152 = scmp.lt.s32.totalorder %s19, 0
        %s153 = scalar_select %p152, %s19, 0
        %s154 = scalar_lea.vmem %s2, %s153
      $region20: #{custom_linear.1} parent=11 // pred_fallthru
        _
    $region12: #{custom_linear.1} parent=5 // pred_fallthru
      _
    %p155 = scmp.lt.s32.totalorder %s9, 2
    // Predicated region
    $region21: #{custom_linear.1} parent=5 // pred_check
      %p156 = pneg %p155
    $region22: #{custom_linear.1} parent=5 // pred_check_branch
      %158 = sbr.rel (%p156) target = $region24
    $region23: #{custom_linear.1} parent=5 // pred_region
      // Predicated region
      $region25: #{custom_linear.1} parent=23 // pred_check
        %p159 = pneg %p41
      $region26: #{custom_linear.1} parent=23 // pred_check_branch
        %161 = sbr.rel (%p159) target = $region28
      $region27: #{custom_linear.1} parent=23 // pred_region
        %p162 = scmp.lt.s32.totalorder %s16, 1
        %s163 = scalar_select %p162, %s16, 1
        %s164 = smul.addr %s163, 8
        %s165 = scalar_lea.vmem %s0, %s164
      $region28: #{custom_linear.1} parent=23 // pred_fallthru
        _
    $region24: #{custom_linear.1} parent=5 // pred_fallthru
      _
    %p166 = scmp.le.s32.totalorder 1, %s9
    %p167 = scmp.lt.s32.totalorder %s9, 3
    %p168 = pnand %p166, %p167
    %p169 = pneg %p168
    // Predicated region
    $region29: #{custom_linear.1} parent=5 // pred_check
      _
    $region30: #{custom_linear.1} parent=5 // pred_check_branch
      %171 = sbr.rel (%p168) target = $region32
    $region31: #{custom_linear.1} parent=5 // pred_region
      %s172 = ssub.s32 %s9, 1
      %p173 = scmp.lt.s32.totalorder %s18, 1
      %s174 = scalar_select %p173, %s18, 1
      %s175 = smul.addr %s174, 8
      %s176 = scalar_lea.vmem %s0, %s175
      %p177 = pneg %p47
      %p178 = pneg %p44
      %p179 = scmp.lt.s32.totalorder %s19, 0
      %s180 = scalar_select %p179, %s19, 0
      %s181 = smul.addr %s180, 8
      %s182 = scalar_lea.vmem %s1, %s181
      %p183 = pneg %p73
      %p184 = pneg %p70
      %p185 = scmp.lt.s32.totalorder %s19, 0
      %s186 = scalar_select %p185, %s19, 0
      %s187 = scalar_lea.vmem %s2, %s186
      %p188 = pneg %p99
      %p189 = pneg %p96
      %p190 = pneg %p127
      %p191 = pneg %p124
      %p192 = scmp.lt.s32.totalorder %s18, 1
      %s193 = scalar_select %p192, %s18, 1
      %p194 = scmp.lt.s32.totalorder %s19, 0
      %s195 = scalar_select %p194, %s19, 0
      %s196 = sadd.s32 %s195, %s193
      %s197 = smul.addr %s196, 8
      %s198 = scalar_lea.vmem %s3, %s197
      %p199 = scmp.lt.s32.totalorder %s18, 1
      %s200 = scalar_select %p199, %s18, 1
      %s201 = smul.addr %s200, 8
      %s202 = scalar_lea.vmem %s0, %s201
      %p203 = scmp.lt.s32.totalorder %s19, 0
      %s204 = scalar_select %p203, %s19, 0
      %s205 = smul.addr %s204, 8
      %s206 = scalar_lea.vmem %s1, %s205
      %p207 = scmp.lt.s32.totalorder %s19, 0
      %s208 = scalar_select %p207, %s19, 0
      %s209 = scalar_lea.vmem %s2, %s208
      %p210 = scmp.lt.s32.totalorder %s18, 1
      %s211 = scalar_select %p210, %s18, 1
      %p212 = scmp.lt.s32.totalorder %s19, 0
      %s213 = scalar_select %p212, %s19, 0
      %s214 = sadd.s32 %s213, %s211
      %s215 = smul.addr %s214, 8
      %s216 = scalar_lea.vmem %s3, %s215
      %v217 = vld [vmem:[%s202] sm:$0xff]
      %v218 = vld [vmem:[%s206] sm:$0xff]
      %v219 = vld [vmem:[%s206 + $0x8] sm:$0xff]
      %v220 = vld [vmem:[%s206 + $0x10] sm:$0xff]
      %v221 = vld [vmem:[%s206 + $0x18] sm:$0xff]
      %v222 = vld [vmem:[%s206 + $0x20] sm:$0xff]
      %v223 = vld [vmem:[%s206 + $0x28] sm:$0xff]
      %v224 = vld [vmem:[%s206 + $0x30] sm:$0xff]
      %v225 = vld [vmem:[%s206 + $0x38] sm:$0xff]
      %v226 = vld [vmem:[%s206 + $0x40] sm:$0xff]
      %v227 = vld [vmem:[%s206 + $0x48] sm:$0xff]
      %v228 = vld [vmem:[%s206 + $0x50] sm:$0xff]
      %v229 = vld [vmem:[%s206 + $0x58] sm:$0xff]
      %v230 = vld [vmem:[%s206 + $0x60] sm:$0xff]
      %v231 = vld [vmem:[%s206 + $0x68] sm:$0xff]
      %v232 = vld [vmem:[%s206 + $0x70] sm:$0xff]
      %v233 = vld [vmem:[%s206 + $0x78] sm:$0xff]
      %v234 = vld [vmem:[%s209] sm:$0x1]
      %v236 = vperm.slane %v234, 0
      %238 = vmatpush.msra.mxu0 %v233
      %239 = vmatpush.msra.mxu0 %v232
      %240 = vmatpush.msra.mxu0 %v231
      %241 = vmatpush.msra.mxu0 %v230
      %242 = vmatpush.msra.mxu0 %v229
      %243 = vmatpush.msra.mxu0 %v228
      %244 = vmatpush.msra.mxu0 %v227
      %245 = vmatpush.msra.mxu0 %v226
      %246 = vmatpush.msra.mxu0 %v225
      %247 = vmatpush.msra.mxu0 %v224
      %248 = vmatpush.msra.mxu0 %v223
      %249 = vmatpush.msra.mxu0 %v222
      %250 = vmatpush.msra.mxu0 %v221
      %251 = vmatpush.msra.mxu0 %v220
      %252 = vmatpush.msra.mxu0 %v219
      %253 = vmatpush.msra.mxu0 %v218
      %254 = vmatmul.f32.gmra.mxu0 %v217
      %v255 = vpop.f32.mrf.mxu0
      %v256 = vadd.f32 %v236, %v255
      %257 = vdwg.mxu0
      %258 = vst [vmem:[%s216] sm:$0xff] %v256
      %p259 = scmp.lt.s32.totalorder %s18, 1
      %s260 = scalar_select %p259, %s18, 1
      %p261 = scmp.lt.s32.totalorder %s19, 0
      %s262 = scalar_select %p261, %s19, 0
      %s263 = sadd.s32 %s262, %s260
      %s264 = smul.addr %s263, 8
      %s265 = scalar_lea.vmem %s3, %s264
      // Predicated region
      $region33: #{custom_linear.1} parent=31 // pred_check
        %p266 = pneg %p124
      $region34: #{custom_linear.1} parent=31 // pred_check_branch
        %268 = sbr.rel (%p266) target = $region36
      $region35: #{custom_linear.1} parent=31 // pred_region
        _
      $region36: #{custom_linear.1} parent=31 // pred_fallthru
        _
    $region32: #{custom_linear.1} parent=5 // pred_fallthru
      _
    %p269 = scmp.le.s32.totalorder 2, %s9
    // Predicated region
    $region37: #{custom_linear.1} parent=5 // pred_check
      %p270 = pneg %p269
    $region38: #{custom_linear.1} parent=5 // pred_check_branch
      %272 = sbr.rel (%p270) target = $region40
    $region39: #{custom_linear.1} parent=5 // pred_region
      %s273 = ssub.s32 %s9, 2
      // Predicated region
      $region41: #{custom_linear.1} parent=39 // pred_check
        %p274 = pneg %p130
      $region42: #{custom_linear.1} parent=39 // pred_check_branch
        %276 = sbr.rel (%p274) target = $region44
      $region43: #{custom_linear.1} parent=39 // pred_region
        %p277 = scmp.lt.s32.totalorder %s20, 1
        %s278 = scalar_select %p277, %s20, 1
        %p279 = scmp.lt.s32.totalorder %s21, 0
        %s280 = scalar_select %p279, %s21, 0
        %s281 = sadd.s32 %s280, %s278
        %s282 = smul.addr %s281, 8
        %s283 = scalar_lea.vmem %s3, %s282
      $region44: #{custom_linear.1} parent=39 // pred_fallthru
        _
    $region40: #{custom_linear.1} parent=5 // pred_fallthru
      _
  $region6: #{custom_linear.1} parent=0 // loop_footer
    %s13 = sadd.s32 1, %s9
  $region7: #{custom_linear.1} parent=0 // loop_footer_branch
    %8 = sbr.rel target = $region3
  $region8: #{custom_linear.1} parent=0 // loop_exit
    _

</llo_original>
